<compile_context>
chip_gen: v7x
topology: tpu7x:2x2x1
jax: 0.10.0
libtpu: 0.0.40
codegen_flags: <defaults>
</compile_context>

<pallas_src>
import functools

import jax
import jax.numpy as jnp
from jax.experimental import pallas as pl
from jax.experimental.pallas import tpu as pltpu

LANES = 128
MAX_BLOCK_ROWS = 2048  # 2048*128*4B = 1 MiB per f32 input block (sweep 1024..4096)


def _num_parallel_parts():
    """2 partial reductions on v7x (2 TensorCores/chip), else 1."""
    try:
        kind = jax.devices()[0].device_kind.lower()
    except Exception:
        return 1
    return 2 if "v7" in kind else 1


def _maxabs_kernel(steps_per_part, total_rows, block_rows, acc_rows, ragged,
                   yp_ref, yt_ref, max_ref, acc_ref):
    """Pass 1: per-part running max of |y_pred - y_true| (NaNs excluded).

    acc_ref holds acc_rows/8 independent (8, LANES) accumulators (pure VPU
    elementwise max per step); the cross-lane reduce + tiny store happens once
    per part, under pl.when(last step).
    """
    @pl.when(pl.program_id(1) == 0)
    def _():
        acc_ref[...] = jnp.zeros_like(acc_ref)  # |diff| >= 0, so 0 is a safe init

    yp = yp_ref[...].astype(jnp.float32)
    yt = yt_ref[...].astype(jnp.float32)
    d = jnp.abs(yp - yt)
    valid = d == d  # False only for NaN (cheaper than isnan(yp)|isnan(yt))
    if ragged:
        # Boundary block: rows past `total_rows` hold undefined VMEM contents;
        # mask them so they cannot corrupt the max.
        block_idx = pl.program_id(0) * steps_per_part + pl.program_id(1)
        row0 = block_idx * block_rows
        row_ids = row0 + jax.lax.broadcasted_iota(jnp.int32, d.shape, 0)
        valid = valid & (row_ids < total_rows)
    d = jnp.where(valid, d, 0.0)

    # Fold (block_rows, 128) -> (acc_rows, 128) with elementwise maxima (VPU).
    folded = jnp.max(d.reshape(-1, acc_rows, LANES), axis=0)
    acc_ref[...] = jnp.maximum(acc_ref[...], folded)

    @pl.when(pl.program_id(1) == pl.num_programs(1) - 1)
    def _():
        max_ref[...] = jnp.max(acc_ref[...]).reshape(1, 1, 1)  # single XLU reduce


def _berhu_kernel(num_parts, m_ref, yp_ref, yt_ref, out_ref):
    """Pass 2: elementwise BerHu: d if d<=c else (d^2 + c^2) * (0.5/c)."""
    # Combine the per-core partial maxima (num_parts is a small static int).
    m = m_ref[0]
    for p in range(1, num_parts):
        m = jnp.maximum(m, m_ref[p])
    c = 0.2 * m
    # c == 0 (all diffs zero, or all inputs NaN) => every element takes the
    # linear branch, so the reciprocal value is irrelevant; guard the divide
    # instead of clamping so any c > 0 stays exact.
    inv_2c = 0.5 / jnp.where(c > 0.0, c, jnp.float32(1.0))

    yp = yp_ref[...].astype(jnp.float32)
    yt = yt_ref[...].astype(jnp.float32)
    d = jnp.abs(yp - yt)
    quad = (d * d + c * c) * inv_2c
    loss = jnp.where(d <= c, d, quad)
    # NaN slots (d != d) emit 0 (see TODO in berhu_loss).
    out_ref[...] = jnp.where(d == d, loss, 0.0).astype(out_ref.dtype)


def berhu_loss(y_pred, y_true):
    assert y_pred.shape == y_true.shape
    n = y_pred.size
    out_dtype = (y_pred.dtype if jnp.issubdtype(y_pred.dtype, jnp.floating)
                 else jnp.float32)

    yp = jnp.ravel(y_pred)
    yt = jnp.ravel(y_true)

    # Lane-dense (rows, 128) view.  Pad ONLY when n is not a multiple of 128
    # (required for the reshape); zero padding: |0-0| = 0 cannot change the
    # max, and padded outputs are sliced off at the end.
    rows = pl.cdiv(n, LANES)
    pad = rows * LANES - n
    if pad:
        # TODO(synk): this still materializes one HBM copy of each input when
        # n % 128 != 0; a rank-1 ragged kernel would avoid it.
        yp = jnp.pad(yp, (0, pad))
        yt = jnp.pad(yt, (0, pad))
    yp2 = yp.reshape(rows, LANES)
    yt2 = yt.reshape(rows, LANES)

    block_rows = rows if rows <= MAX_BLOCK_ROWS else MAX_BLOCK_ROWS
    total_blocks = pl.cdiv(rows, block_rows)
    ragged = (rows % block_rows) != 0

    num_parts = _num_parallel_parts()
    if num_parts > 1 and (total_blocks < num_parts or total_blocks % num_parts != 0):
        num_parts = 1  # not enough / unevenly splittable work across TensorCores
    steps_per_part = total_blocks // num_parts

    if block_rows % 32 == 0:
        acc_rows = 32       # 4 independent (8,128) accumulators -> VALU ILP
    elif block_rows % 8 == 0:
        acc_rows = 8
    else:
        acc_rows = block_rows  # tiny single-block case

    if num_parts > 1:
        sem1 = (pltpu.CORE_PARALLEL, pltpu.ARBITRARY)
        sem2 = (pltpu.CORE_PARALLEL, pltpu.ARBITRARY)
    else:
        sem1 = ("parallel", "arbitrary")
        sem2 = ("parallel", "parallel")

    # Pass 1: per-part max of |diff| (resident vreg accumulators, one final reduce).
    max_partials = pl.pallas_call(
        functools.partial(_maxabs_kernel, steps_per_part, rows, block_rows,
                          acc_rows, ragged),
        out_shape=jax.ShapeDtypeStruct((num_parts, 1, 1), jnp.float32),
        grid=(num_parts, steps_per_part),
        in_specs=[
            pl.BlockSpec((block_rows, LANES),
                         lambda p, s: (p * steps_per_part + s, 0)),
            pl.BlockSpec((block_rows, LANES),
                         lambda p, s: (p * steps_per_part + s, 0)),
        ],
        out_specs=pl.BlockSpec((1, 1, 1), lambda p, s: (p, 0, 0)),
        scratch_shapes=[pltpu.VMEM((acc_rows, LANES), jnp.float32)],
        compiler_params=pltpu.CompilerParams(dimension_semantics=sem1),
    )(yp2, yt2)

    max_partials = max_partials.reshape(num_parts)  # free bitcast

    # Pass 2: elementwise BerHu; partial maxima consumed directly from SMEM.
    loss2 = pl.pallas_call(
        functools.partial(_berhu_kernel, num_parts),
        out_shape=jax.ShapeDtypeStruct((rows, LANES), out_dtype),
        grid=(num_parts, steps_per_part),
        in_specs=[
            pl.BlockSpec(memory_space=pltpu.MemorySpace.SMEM),
            pl.BlockSpec((block_rows, LANES),
                         lambda p, s: (p * steps_per_part + s, 0)),
            pl.BlockSpec((block_rows, LANES),
                         lambda p, s: (p * steps_per_part + s, 0)),
        ],
        out_specs=pl.BlockSpec((block_rows, LANES),
                               lambda p, s: (p * steps_per_part + s, 0)),
        compiler_params=pltpu.CompilerParams(dimension_semantics=sem2),
    )(max_partials, yp2, yt2)

    # TODO(synk): torch.masked_select yields a data-dependent-length 1-D tensor
    # when NaNs are present; with static shapes we return the loss at every
    # position (NaN positions contribute 0) flattened to the unpadded length.
    return loss2.reshape(-1)[:n]


def berhu_ref(y_pred, y_true):
    """Pure-JAX reference (NaN-free inputs) mirroring the PyTorch forward."""
    d = jnp.abs(jnp.ravel(y_pred) - jnp.ravel(y_true)).astype(jnp.float32)
    c = 0.2 * jnp.max(d)
    return jnp.where(d <= c, d, (d * d + c * c) / (2.0 * c)).astype(y_pred.dtype)


if __name__ == "__main__":
    key = jax.random.PRNGKey(0)
    k1, k2 = jax.random.split(key)
    shape = (2, 4, 16, 16)  # NCHW
    y_pred = jax.random.normal(k1, shape, dtype=jnp.float32)
    y_true = jax.random.normal(k2, shape, dtype=jnp.float32)

    loss = jax.jit(berhu_loss)(y_pred, y_true)
    loss = jax.block_until_ready(loss)

    ref = berhu_ref(y_pred, y_true)
    assert loss.shape == ref.shape
    assert jnp.allclose(loss, ref, atol=1e-5, rtol=1e-5)

    print("KERNEL_OK")
</pallas_src>

<mosaic_0001>
module attributes {stable_mosaic.version = 11 : i64} {
  func.func @_maxabs_kernel(%arg0: i32, %arg1: i32, %arg2: memref<16x128xf32, #tpu.memory_space<vmem>>, %arg3: memref<16x128xf32, #tpu.memory_space<vmem>>, %arg4: memref<1x1x1xf32, #tpu.memory_space<vmem>>, %arg5: memref<8x128xf32, #tpu.memory_space<vmem>>) attributes {dimension_semantics = [#tpu.dimension_semantics<parallel>, #tpu.dimension_semantics<arbitrary>], iteration_bounds = array<i64: 1, 1>, scalar_prefetch = 0 : i64, scratch_operands = 1 : i64, tpu.core_type = #tpu.core_type<tc>, window_params = [{transform_indices = @transform_0, window_bounds = array<i64: 16, 128>}, {transform_indices = @transform_1, window_bounds = array<i64: 16, 128>}, {transform_indices = @transform_2, window_bounds = array<i64: 1, 1, 1>}]} {
    %c0_i32 = arith.constant 0 : i32
    %0 = arith.cmpi eq, %arg1, %c0_i32 : i32
    %1 = arith.extui %0 : i1 to i32
    %c0_i32_0 = arith.constant 0 : i32
    %2 = arith.cmpi ne, %1, %c0_i32_0 : i32
    scf.if %2 {
      %cst_11 = arith.constant 0.000000e+00 : f32
      %18 = vector.broadcast %cst_11 : f32 to vector<8x128xf32>
      %c0_12 = arith.constant 0 : index
      %c0_13 = arith.constant 0 : index
      %19 = vector.load %arg5[%c0_12, %c0_13] : memref<8x128xf32, #tpu.memory_space<vmem>>, vector<8x128xf32>
      tpu.vector_store %arg5[%c0_12, %c0_13], %18 {strides = array<i32>} : memref<8x128xf32, #tpu.memory_space<vmem>>, vector<8x128xf32>,
    } else {
    }
    %c0 = arith.constant 0 : index
    %c0_1 = arith.constant 0 : index
    %3 = vector.load %arg2[%c0, %c0_1] : memref<16x128xf32, #tpu.memory_space<vmem>>, vector<16x128xf32>
    %c0_2 = arith.constant 0 : index
    %c0_3 = arith.constant 0 : index
    %4 = vector.load %arg3[%c0_2, %c0_3] : memref<16x128xf32, #tpu.memory_space<vmem>>, vector<16x128xf32>
    %5 = arith.subf %3, %4 : vector<16x128xf32>
    %6 = math.absf %5 : vector<16x128xf32>
    %7 = arith.cmpf oeq, %6, %6 : vector<16x128xf32>
    %cst = arith.constant 0.000000e+00 : f32
    %8 = vector.broadcast %cst : f32 to vector<16x128xf32>
    %9 = arith.select %7, %6, %8 : vector<16x128xi1>, vector<16x128xf32>
    %10 = vector.shape_cast %9 : vector<16x128xf32> to vector<2x8x128xf32>
    %cst_4 = arith.constant dense<0xFF800000> : vector<8x128xf32>
    %11 = vector.multi_reduction <maximumf>, %10, %cst_4 [0] : vector<2x8x128xf32> to vector<8x128xf32>
    %c0_5 = arith.constant 0 : index
    %c0_6 = arith.constant 0 : index
    %12 = vector.load %arg5[%c0_5, %c0_6] : memref<8x128xf32, #tpu.memory_space<vmem>>, vector<8x128xf32>
    %13 = arith.maximumf %12, %11 : vector<8x128xf32>
    %c0_7 = arith.constant 0 : index
    %c0_8 = arith.constant 0 : index
    %14 = vector.load %arg5[%c0_7, %c0_8] : memref<8x128xf32, #tpu.memory_space<vmem>>, vector<8x128xf32>
    tpu.vector_store %arg5[%c0_7, %c0_8], %13 {strides = array<i32>} : memref<8x128xf32, #tpu.memory_space<vmem>>, vector<8x128xf32>,
    %c0_i32_9 = arith.constant 0 : i32
    %15 = arith.cmpi eq, %arg1, %c0_i32_9 : i32
    %16 = arith.extui %15 : i1 to i32
    %c0_i32_10 = arith.constant 0 : i32
    %17 = arith.cmpi ne, %16, %c0_i32_10 : i32
    scf.if %17 {
      %c0_11 = arith.constant 0 : index
      %c0_12 = arith.constant 0 : index
      %18 = vector.load %arg5[%c0_11, %c0_12] : memref<8x128xf32, #tpu.memory_space<vmem>>, vector<8x128xf32>
      %19 = vector.shape_cast %18 : vector<8x128xf32> to vector<1x8x128xf32>
      %cst_13 = arith.constant dense<0xFF800000> : vector<1xf32>
      %20 = vector.multi_reduction <maximumf>, %19, %cst_13 [1, 2] : vector<1x8x128xf32> to vector<1xf32>
      %21 = vector.shape_cast %20 : vector<1xf32> to vector<1x1x1xf32>
      %22 = vector.extract %21[0, 0, 0] : f32 from vector<1x1x1xf32>
      %23 = vector.broadcast %22 : f32 to vector<1x1x1xf32>
      %c0_14 = arith.constant 0 : index
      %c0_15 = arith.constant 0 : index
      %c0_16 = arith.constant 0 : index
      %24 = vector.load %arg4[%c0_14, %c0_15, %c0_16] : memref<1x1x1xf32, #tpu.memory_space<vmem>>, vector<1x1x1xf32>
      tpu.vector_store %arg4[%c0_14, %c0_15, %c0_16], %23 {strides = array<i32>} : memref<1x1x1xf32, #tpu.memory_space<vmem>>, vector<1x1x1xf32>,
    } else {
    }
    return
  }
  func.func @transform_0(%arg0: i32, %arg1: i32) -> (i32, i32) {
    %c1_i32 = arith.constant 1 : i32
    %0 = arith.muli %arg0, %c1_i32 : i32
    %1 = arith.addi %0, %arg1 : i32
    %c0_i32 = arith.constant 0 : i32
    %c0_i32_0 = arith.constant 0 : i32
    return %1, %c0_i32 : i32, i32
  }
  func.func @transform_1(%arg0: i32, %arg1: i32) -> (i32, i32) {
    %c1_i32 = arith.constant 1 : i32
    %0 = arith.muli %arg0, %c1_i32 : i32
    %1 = arith.addi %0, %arg1 : i32
    %c0_i32 = arith.constant 0 : i32
    %c0_i32_0 = arith.constant 0 : i32
    return %1, %c0_i32 : i32, i32
  }
  func.func @transform_2(%arg0: i32, %arg1: i32) -> (i32, i32, i32) {
    %c0_i32 = arith.constant 0 : i32
    %c0_i32_0 = arith.constant 0 : i32
    %c0_i32_1 = arith.constant 0 : i32
    return %arg0, %c0_i32, %c0_i32_0 : i32, i32, i32
  }
}

module attributes {stable_mosaic.version = 11 : i64} {
  func.func @_berhu_kernel(%arg0: i32, %arg1: i32, %arg2: memref<1xf32, #tpu.memory_space<smem>>, %arg3: memref<16x128xf32, #tpu.memory_space<vmem>>, %arg4: memref<16x128xf32, #tpu.memory_space<vmem>>, %arg5: memref<16x128xf32, #tpu.memory_space<vmem>>) attributes {dimension_semantics = [#tpu.dimension_semantics<parallel>, #tpu.dimension_semantics<parallel>], iteration_bounds = array<i64: 1, 1>, scalar_prefetch = 0 : i64, scratch_operands = 0 : i64, tpu.core_type = #tpu.core_type<tc>, window_params = [{transform_indices = @transform_0, window_bounds = array<i64: 1>}, {transform_indices = @transform_1, window_bounds = array<i64: 16, 128>}, {transform_indices = @transform_2, window_bounds = array<i64: 16, 128>}, {transform_indices = @transform_3, window_bounds = array<i64: 16, 128>}]} {
    %c0 = arith.constant 0 : index
    %0 = memref.load %arg2[%c0] : memref<1xf32, #tpu.memory_space<smem>>
    %cst = arith.constant 2.000000e-01 : f32
    %1 = arith.mulf %cst, %0 : f32
    %cst_0 = arith.constant 0.000000e+00 : f32
    %2 = arith.cmpf ogt, %1, %cst_0 : f32
    %cst_1 = arith.constant 1.000000e+00 : f32
    %3 = arith.select %2, %1, %cst_1 : f32
    %cst_2 = arith.constant 5.000000e-01 : f32
    %4 = arith.divf %cst_2, %3 : f32
    %c0_3 = arith.constant 0 : index
    %c0_4 = arith.constant 0 : index
    %5 = vector.load %arg3[%c0_3, %c0_4] : memref<16x128xf32, #tpu.memory_space<vmem>>, vector<16x128xf32>
    %c0_5 = arith.constant 0 : index
    %c0_6 = arith.constant 0 : index
    %6 = vector.load %arg4[%c0_5, %c0_6] : memref<16x128xf32, #tpu.memory_space<vmem>>, vector<16x128xf32>
    %7 = arith.subf %5, %6 : vector<16x128xf32>
    %8 = math.absf %7 : vector<16x128xf32>
    %9 = arith.mulf %8, %8 : vector<16x128xf32>
    %10 = arith.mulf %1, %1 : f32
    %11 = vector.broadcast %10 : f32 to vector<16x128xf32>
    %12 = arith.addf %9, %11 : vector<16x128xf32>
    %13 = vector.broadcast %4 : f32 to vector<16x128xf32>
    %14 = arith.mulf %12, %13 : vector<16x128xf32>
    %15 = vector.broadcast %1 : f32 to vector<16x128xf32>
    %16 = arith.cmpf ole, %8, %15 : vector<16x128xf32>
    %17 = arith.select %16, %8, %14 : vector<16x128xi1>, vector<16x128xf32>
    %18 = arith.cmpf oeq, %8, %8 : vector<16x128xf32>
    %cst_7 = arith.constant 0.000000e+00 : f32
    %19 = vector.broadcast %cst_7 : f32 to vector<16x128xf32>
    %20 = arith.select %18, %17, %19 : vector<16x128xi1>, vector<16x128xf32>
    %c0_8 = arith.constant 0 : index
    %c0_9 = arith.constant 0 : index
    %21 = vector.load %arg5[%c0_8, %c0_9] : memref<16x128xf32, #tpu.memory_space<vmem>>, vector<16x128xf32>
    tpu.vector_store %arg5[%c0_8, %c0_9], %20 {strides = array<i32>} : memref<16x128xf32, #tpu.memory_space<vmem>>, vector<16x128xf32>,
    return
  }
  func.func @transform_0(%arg0: i32, %arg1: i32) -> i32 {
    %c0_i32 = arith.constant 0 : i32
    %c0_i32_0 = arith.constant 0 : i32
    return %c0_i32 : i32
  }
  func.func @transform_1(%arg0: i32, %arg1: i32) -> (i32, i32) {
    %c1_i32 = arith.constant 1 : i32
    %0 = arith.muli %arg0, %c1_i32 : i32
    %1 = arith.addi %0, %arg1 : i32
    %c0_i32 = arith.constant 0 : i32
    %c0_i32_0 = arith.constant 0 : i32
    return %1, %c0_i32 : i32, i32
  }
  func.func @transform_2(%arg0: i32, %arg1: i32) -> (i32, i32) {
    %c1_i32 = arith.constant 1 : i32
    %0 = arith.muli %arg0, %c1_i32 : i32
    %1 = arith.addi %0, %arg1 : i32
    %c0_i32 = arith.constant 0 : i32
    %c0_i32_0 = arith.constant 0 : i32
    return %1, %c0_i32 : i32, i32
  }
  func.func @transform_3(%arg0: i32, %arg1: i32) -> (i32, i32) {
    %c1_i32 = arith.constant 1 : i32
    %0 = arith.muli %arg0, %c1_i32 : i32
    %1 = arith.addi %0, %arg1 : i32
    %c0_i32 = arith.constant 0 : i32
    %c0_i32_0 = arith.constant 0 : i32
    return %1, %c0_i32 : i32, i32
  }
}

</mosaic_0001>

<llo_original>
// kernel: berhu_loss.2
$region0: #{berhu_loss.2}
  #allocation0 [shape = 'u32[]', space=smem, size = 0x4, offset = 0x4, fixed_abs, tag = 'smem constant byte address 0x4 - core index']
  #allocation1 [shape = 'u32[144,128]{1,0:T(1,128)}', space=vmem, size = 0x12000, scoped, tag = 'internal scratch']
  #allocation2 [shape = 'f32[8,128]{1,0:T(8,128)}', space=vmem, size = 0x1000, scoped, tag = 'scratch operand']
  %s0 = inlined_call_operand.vmem [shape: f32[16,128], index: 0, kind: input, shape index: {}]
  %s1 = inlined_call_operand.vmem [shape: f32[16,128], index: 1, kind: input, shape index: {}]
  %s2 = inlined_call_operand.hbm [shape: f32[1,1,1], index: 2, kind: output, shape index: {}]
  %s3 = sld [smem:[#allocation0]]
  $region26: #{berhu_loss.2} parent=0
    _
  %s5 = ssub.s32 1, %s3
  %s6 = scalar_select 0, %s5, %s3
  $region1: #{berhu_loss.2} parent=0
    #allocation3 [shape = 'u8[512]{0}', space=vmem, size = 0x400, scoped, tag = 'output window, operand 0, single buffered']
    #allocation4 [shape = 's32[1]{0}', space=sflag, size = 0x4, scoped, tag = 'scoped memory for berhu_loss.2']
    %7 = vsyncpa [#allocation4], 0
    // Predicated region
    $region2: #{berhu_loss.2} parent=1 // pred_check
      _
    $region3: #{berhu_loss.2} parent=1 // pred_check_branch
      %9 = sbr.rel (0) target = $region5
    $region4: #{berhu_loss.2} parent=1 // pred_region
      %s10 = sadd.s32 0, 0
      %s11 = smul.u32 2, %s10
      %p12 = scmp.lt.s32.totalorder %s11, 1
      %s13 = scalar_select %p12, %s11, 1
      %s14 = smul.addr %s13, 8
      %s15 = scalar_lea.vmem %s0, %s14
      %s16 = sadd.s32 0, 0
      %s17 = smul.u32 2, %s16
    $region5: #{berhu_loss.2} parent=1 // pred_fallthru
      _
    // Predicated region
    $region6: #{berhu_loss.2} parent=1 // pred_check
      _
    $region7: #{berhu_loss.2} parent=1 // pred_check_branch
      %19 = sbr.rel (0) target = $region9
    $region8: #{berhu_loss.2} parent=1 // pred_region
      %s20 = sadd.s32 0, 0
      %s21 = smul.u32 2, %s20
      %p22 = scmp.lt.s32.totalorder %s21, 1
      %s23 = scalar_select %p22, %s21, 1
      %s24 = smul.addr %s23, 8
      %s25 = scalar_lea.vmem %s1, %s24
      %s26 = sadd.s32 0, 0
      %s27 = smul.u32 2, %s26
    $region9: #{berhu_loss.2} parent=1 // pred_fallthru
      _
    %s28 = sadd.s32 0, 0
    %s29 = smul.u32 2, %s28
    %p30 = scmp.lt.s32.totalorder %s29, 1
    %s31 = scalar_select %p30, %s29, 1
    %s32 = smul.addr %s31, 8
    %s33 = scalar_lea.vmem %s0, %s32
    %s34 = sadd.s32 0, 0
    %s35 = smul.u32 2, %s34
    %p36 = scmp.lt.s32.totalorder %s35, 1
    %s37 = scalar_select %p36, %s35, 1
    %s38 = smul.addr %s37, 8
    %s39 = scalar_lea.vmem %s1, %s38
    %s40 = sadd.s32 0, 0
    %s41 = smul.u32 2, %s40
    %p42 = scmp.lt.s32.totalorder %s41, 1
    %s43 = scalar_select %p42, %s41, 1
    %s44 = smul.addr %s43, 8
    %s45 = scalar_lea.vmem %s0, %s44
    %s46 = sadd.s32 0, 0
    %s47 = smul.u32 2, %s46
    %s48 = sadd.s32 0, 0
    %s49 = smul.u32 2, %s48
    %p50 = scmp.lt.s32.totalorder %s49, 1
    %s51 = scalar_select %p50, %s49, 1
    %s52 = smul.addr %s51, 8
    %s53 = scalar_lea.vmem %s1, %s52
    %s54 = sadd.s32 0, 0
    %s55 = smul.u32 2, %s54
    %p56 = scmp.eq.s32.totalorder 0, 0
    // Predicated region
    $region10: #{berhu_loss.2} parent=1 // pred_check
      %p57 = pneg %p56
    $region11: #{berhu_loss.2} parent=1 // pred_check_branch
      %59 = sbr.rel (%p57) target = $region13
    $region12: #{berhu_loss.2} parent=1 // pred_region
      %60 = vst [vmem:[#allocation2] sm:$0xff] 0.0
    $region13: #{berhu_loss.2} parent=1 // pred_fallthru
      _
    %v61 = vld [vmem:[%s45] sm:$0xff]
    %v62 = vld [vmem:[%s45 + $0x8] sm:$0xff]
    %v63 = vld [vmem:[%s53] sm:$0xff]
    %v64 = vld [vmem:[%s53 + $0x8] sm:$0xff]
    %v65 = vsub.f32 %v61, %v63
    %v66 = vsub.f32 %v62, %v64
    %v67 = vand.u32 2147483647, %v65
    %v68 = vand.u32 2147483647, %v66
    %vm69 = vcmp.eq.f32.partialorder %v67, %v67
    %vm70 = vcmp.eq.f32.partialorder %v68, %v68
    %v71 = vsel %vm69, %v67, 0.0
    %v72 = vsel %vm70, %v68, 0.0
    %v73 = vmax.f32 %v71, %v72
    %v74 = vld [vmem:[#allocation2] sm:$0xff]
    %v75 = vmax.f32 %v74, %v73
    %76 = vst [vmem:[#allocation2] sm:$0xff] %v75
    // Predicated region
    $region14: #{berhu_loss.2} parent=1 // pred_check
      %p77 = pneg %p56
    $region15: #{berhu_loss.2} parent=1 // pred_check_branch
      %79 = sbr.rel (%p77) target = $region17
    $region16: #{berhu_loss.2} parent=1 // pred_region
      %v80 = vld [vmem:[#allocation2] sm:$0xff]
      %81 = vmax.xlane.f32.xlu0 %v80
      %v82 = vpop.xlane.xlu0 %81
      %v83 = vrot.slane %v82, 4
      %v84 = vmax.f32 %v82, %v83
      %v85 = vrot.slane %v84, 2
      %v86 = vmax.f32 %v84, %v85
      %v87 = vrot.slane %v86, 1
      %v88 = vmax.f32 %v86, %v87
      %s89 = vtos %v88
      %v90 = vstv %s89
      %vm91 = vcmask 0
      %92 = vst.msk [vmem:[#allocation3] sm:$0x1] %vm91, %v90
    $region17: #{berhu_loss.2} parent=1 // pred_fallthru
      _
    // Predicated region
    $region18: #{berhu_loss.2} parent=1 // pred_check
      _
    $region19: #{berhu_loss.2} parent=1 // pred_check_branch
      %94 = sbr.rel (0) target = $region21
    $region20: #{berhu_loss.2} parent=1 // pred_region
      %s96 = ssub.s32 16, 16
      %97 = vsyncadd [#allocation4], %s96
      %s99 = sshll.u32 [#allocation3], 4
      %s100 = int_to_ptr.vmem [resolvable:$true] %s99
      %102 = dma.vmem_to_hbm [thread:$0]  %s100, 16, %s2, [#allocation4]
    $region21: #{berhu_loss.2} parent=1 // pred_fallthru
      _
    // Predicated region
    $region22: #{berhu_loss.2} parent=1 // pred_check
      _
    $region23: #{berhu_loss.2} parent=1 // pred_check_branch
      %104 = sbr.rel (0) target = $region25
    $region24: #{berhu_loss.2} parent=1 // pred_region
      %105 = dma.done [#allocation4], 16
    $region25: #{berhu_loss.2} parent=1 // pred_fallthru
      _
    %106 = vsyncpa [#allocation4], 1

// kernel: berhu_loss.3
$region0: #{berhu_loss.3}
  #allocation0 [shape = 'u32[]', space=smem, size = 0x4, offset = 0x4, fixed_abs, tag = 'smem constant byte address 0x4 - core index']
  #allocation1 [shape = 'u32[144,128]{1,0:T(1,128)}', space=vmem, size = 0x12000, scoped, tag = 'internal scratch']
  #allocation2 [shape = 'f32[1]{0:T(128)S(6)}', space=smem, size = 0x200, scoped, tag = 'scoped memory for berhu_loss.3']
  %s0 = inlined_call_operand.<no memory space> [shape: f32[1], index: 0, kind: input, shape index: {}]
  %s1 = inlined_call_operand.vmem [shape: f32[16,128], index: 1, kind: input, shape index: {}]
  %s2 = inlined_call_operand.vmem [shape: f32[16,128], index: 2, kind: input, shape index: {}]
  %s3 = inlined_call_operand.hbm [shape: f32[16,128], index: 3, kind: output, shape index: {}]
  %s4 = sld [smem:[#allocation0]]
  $region22: #{berhu_loss.3} parent=0
    _
  %s6 = ssub.s32 1, %s4
  %s7 = scalar_select 0, %s6, %s4
  %8 = sst [smem:[#allocation2]] %s0
  $region1: #{berhu_loss.3} parent=0
    #allocation3 [shape = 'u8[8192]{0}', space=vmem, size = 0x2000, scoped, tag = 'output window, operand 0, single buffered']
    #allocation4 [shape = 's32[1]{0}', space=sflag, size = 0x4, scoped, tag = 'scoped memory for berhu_loss.3']
    %9 = vsyncpa [#allocation4], 0
    // Predicated region
    $region2: #{berhu_loss.3} parent=1 // pred_check
      _
    $region3: #{berhu_loss.3} parent=1 // pred_check_branch
      %11 = sbr.rel (0) target = $region5
    $region4: #{berhu_loss.3} parent=1 // pred_region
      _
    $region5: #{berhu_loss.3} parent=1 // pred_fallthru
      _
    // Predicated region
    $region6: #{berhu_loss.3} parent=1 // pred_check
      _
    $region7: #{berhu_loss.3} parent=1 // pred_check_branch
      %13 = sbr.rel (0) target = $region9
    $region8: #{berhu_loss.3} parent=1 // pred_region
      %s14 = sadd.s32 0, 0
      %s15 = smul.u32 2, %s14
      %p16 = scmp.lt.s32.totalorder %s15, 1
      %s17 = scalar_select %p16, %s15, 1
      %s18 = smul.addr %s17, 8
      %s19 = scalar_lea.vmem %s1, %s18
      %s20 = sadd.s32 0, 0
      %s21 = smul.u32 2, %s20
    $region9: #{berhu_loss.3} parent=1 // pred_fallthru
      _
    // Predicated region
    $region10: #{berhu_loss.3} parent=1 // pred_check
      _
    $region11: #{berhu_loss.3} parent=1 // pred_check_branch
      %23 = sbr.rel (0) target = $region13
    $region12: #{berhu_loss.3} parent=1 // pred_region
      %s24 = sadd.s32 0, 0
      %s25 = smul.u32 2, %s24
      %p26 = scmp.lt.s32.totalorder %s25, 1
      %s27 = scalar_select %p26, %s25, 1
      %s28 = smul.addr %s27, 8
      %s29 = scalar_lea.vmem %s2, %s28
      %s30 = sadd.s32 0, 0
      %s31 = smul.u32 2, %s30
    $region13: #{berhu_loss.3} parent=1 // pred_fallthru
      _
    %s32 = sadd.s32 0, 0
    %s33 = smul.u32 2, %s32
    %p34 = scmp.lt.s32.totalorder %s33, 1
    %s35 = scalar_select %p34, %s33, 1
    %s36 = smul.addr %s35, 8
    %s37 = scalar_lea.vmem %s1, %s36
    %s38 = sadd.s32 0, 0
    %s39 = smul.u32 2, %s38
    %p40 = scmp.lt.s32.totalorder %s39, 1
    %s41 = scalar_select %p40, %s39, 1
    %s42 = smul.addr %s41, 8
    %s43 = scalar_lea.vmem %s2, %s42
    %s44 = sadd.s32 0, 0
    %s45 = smul.u32 2, %s44
    %p46 = scmp.lt.s32.totalorder %s45, 1
    %s47 = scalar_select %p46, %s45, 1
    %s48 = smul.addr %s47, 8
    %s49 = scalar_lea.vmem %s1, %s48
    %s50 = sadd.s32 0, 0
    %s51 = smul.u32 2, %s50
    %s52 = sadd.s32 0, 0
    %s53 = smul.u32 2, %s52
    %p54 = scmp.lt.s32.totalorder %s53, 1
    %s55 = scalar_select %p54, %s53, 1
    %s56 = smul.addr %s55, 8
    %s57 = scalar_lea.vmem %s2, %s56
    %s58 = sadd.s32 0, 0
    %s59 = smul.u32 2, %s58
    %s60 = sadd.s32 0, 0
    %s61 = smul.u32 2, %s60
    %s62 = sld [smem:[#allocation2]]
    %s63 = smul.f32 %s62, 0.2
    %p64 = scmp.gt.f32.partialorder %s63, 0.0
    %s65 = scalar_select %p64, %s63, 1.0
    %v66 = vstv %s65
    %v67 = vrcp.pop %v66
    %s68 = vtos %v67
    %s69 = smul.f32 0.5, %s68
    %v70 = vld [vmem:[%s49] sm:$0xff]
    %v71 = vld [vmem:[%s49 + $0x8] sm:$0xff]
    %v72 = vld [vmem:[%s57] sm:$0xff]
    %v73 = vld [vmem:[%s57 + $0x8] sm:$0xff]
    %v74 = vsub.f32 %v70, %v72
    %v75 = vsub.f32 %v71, %v73
    %v76 = vand.u32 2147483647, %v74
    %v77 = vand.u32 2147483647, %v75
    %v78 = vmul.f32 %v76, %v76
    %v79 = vmul.f32 %v77, %v77
    %s80 = smul.f32 %s63, %s63
    %v81 = vstv %s80
    %v82 = vadd.f32 %v78, %v81
    %v83 = vadd.f32 %v79, %v81
    %v84 = vstv %s69
    %v85 = vmul.f32 %v82, %v84
    %v86 = vmul.f32 %v83, %v84
    %v87 = vstv %s63
    %vm88 = vcmp.le.f32.partialorder %v76, %v87
    %vm89 = vcmp.le.f32.partialorder %v77, %v87
    %v90 = vsel %vm88, %v76, %v85
    %v91 = vsel %vm89, %v77, %v86
    %vm92 = vcmp.eq.f32.partialorder %v76, %v76
    %vm93 = vcmp.eq.f32.partialorder %v77, %v77
    %v94 = vsel %vm92, %v90, 0.0
    %v95 = vsel %vm93, %v91, 0.0
    %96 = vst [vmem:[#allocation3] sm:$0xff] %v94
    %97 = vst [vmem:[#allocation3 + $0x8] sm:$0xff] %v95
    // Predicated region
    $region14: #{berhu_loss.3} parent=1 // pred_check
      _
    $region15: #{berhu_loss.3} parent=1 // pred_check_branch
      %99 = sbr.rel (0) target = $region17
    $region16: #{berhu_loss.3} parent=1 // pred_region
      %s100 = sadd.s32 0, 0
      %s101 = smul.u32 2, %s100
      %s103 = ssub.s32 256, 256
      %104 = vsyncadd [#allocation4], %s103
      %s105 = smul.addr %s101, 128
      %s106 = scalar_lea.hbm %s3, %s105
      %s107 = sshll.u32 [#allocation3], 4
      %s108 = int_to_ptr.vmem [resolvable:$true] %s107
      %113 = dma.vmem_to_hbm [thread:$0]  %s108, 256, %s106, [#allocation4], 128, 128, 8
    $region17: #{berhu_loss.3} parent=1 // pred_fallthru
      _
    // Predicated region
    $region18: #{berhu_loss.3} parent=1 // pred_check
      _
    $region19: #{berhu_loss.3} parent=1 // pred_check_branch
      %115 = sbr.rel (0) target = $region21
    $region20: #{berhu_loss.3} parent=1 // pred_region
      %116 = dma.done [#allocation4], 256
    $region21: #{berhu_loss.3} parent=1 // pred_fallthru
      _
    %117 = vsyncpa [#allocation4], 1

</llo_original>
